<compile_context>
chip_gen: v7x
topology: tpu7x:2x2x1
jax: 0.10.0
libtpu: 0.0.40
codegen_flags: <defaults>
</compile_context>

<pallas_src>
import functools
import math

import jax
import jax.numpy as jnp
import numpy as np
from jax.experimental import pallas as pl
from jax.experimental.pallas import tpu as pltpu

_LANE = 128
_SUBLANE = 8


def _round_up(x, m):
    return ((x + m - 1) // m) * m


def _pad2d(a, rows, cols):
    a = jnp.asarray(a)
    out = jnp.zeros((rows, cols), a.dtype)
    return out.at[: a.shape[0], : a.shape[1]].set(a)


def _sto_net2_kernel(sqrt_c_in, sqrt_cs, pads, p_out, noise_offs, bias_offs,
                     out_offs, n_hidden, *refs):
    """Fused forward pass.

    refs = (in_slab, bias_slab, W_0 .. W_{n_hidden-1}, W_final, out_slab)
      in_slab  : (Bt, P_in)  f32   column blocks [x | noise_0 | ... | noise_n]
      bias_slab: (1,  P_b)   f32   column blocks [b_1 | ... | b_n | b_final]
      W_i      : (p_i, p_{i+1}) bf16, pre-transposed so z = x @ W
      out_slab : (Bt, P_out) f32   column blocks [state_0 | ... | state_n | state_final]
    All offsets/widths are static Python ints, multiples of 128 (lane-dense slices).
    Zero-padding in the extra lanes propagates as exact zeros through every layer.
    """
    n_w = n_hidden + 1
    in_ref = refs[0]
    bias_ref = refs[1]
    w_refs = refs[2:2 + n_w]
    out_ref = refs[2 + n_w]

    p0 = pads[0]
    # state_0 = img.view(-1, dim_in) + randn * sqrt(C_in)
    x = in_ref[:, 0:p0] + sqrt_c_in * in_ref[:, noise_offs[0]:noise_offs[0] + p0]
    out_ref[:, out_offs[0]:out_offs[0] + p0] = x

    for i in range(n_hidden):
        po = pads[i + 1]
        # nn.Linear with pre-transposed bf16 weight: z = x @ W + b   (MXU, f32 acc)
        z = jnp.dot(x.astype(jnp.bfloat16), w_refs[i][...],
                    preferred_element_type=jnp.float32)
        z = z + bias_ref[:, bias_offs[i]:bias_offs[i] + po]
        # heaviside activation: (z > 0).float()   (VPU, f32)
        a = (z > 0).astype(jnp.float32)
        # state_{i+1} = act + randn * sqrt(Cs_list[i])
        no = noise_offs[i + 1]
        x = a + sqrt_cs[i] * in_ref[:, no:no + po]
        out_ref[:, out_offs[i + 1]:out_offs[i + 1] + po] = x

    # final linear (no activation, no noise)
    zf = jnp.dot(x.astype(jnp.bfloat16), w_refs[n_hidden][...],
                 preferred_element_type=jnp.float32)
    zf = zf + bias_ref[:, bias_offs[n_hidden]:bias_offs[n_hidden] + p_out]
    out_ref[:, out_offs[n_hidden + 1]:out_offs[n_hidden + 1] + p_out] = zf


def sto_net2_forward(img, weights, biases, w_final, b_final, noises, c_in, cs_list):
    """Pallas wrapper reproducing sto_Net2.forward; returns the list of states."""
    n_hidden = len(weights)
    assert len(cs_list) == n_hidden and len(noises) == n_hidden + 1

    dims = [int(weights[0].shape[1])] + [int(w.shape[0]) for w in weights]
    dim_out = int(w_final.shape[0])
    pads = tuple(_round_up(d, _LANE) for d in dims)
    p_out = _round_up(dim_out, _LANE)

    B = int(np.prod(img.shape)) // dims[0]
    x = jnp.asarray(img, jnp.float32).reshape(B, dims[0])   # img.view(-1, dim_in)

    # Batch tiling: pad rows to a sublane multiple; larger batches get a parallel grid.
    b_tile = min(_round_up(B, _SUBLANE), 128)
    B_pad = _round_up(B, b_tile)

    # ---- pack per-batch data into one lane-aligned slab: [x | noise_0 | ... | noise_n]
    pieces = [_pad2d(x, B_pad, pads[0])]
    noise_offs = []
    off = pads[0]
    for i in range(n_hidden + 1):
        noise_offs.append(off)
        pieces.append(_pad2d(jnp.asarray(noises[i], jnp.float32), B_pad, pads[i]))
        off += pads[i]
    in_slab = jnp.concatenate(pieces, axis=1)
    in_width = int(in_slab.shape[1])

    # ---- pack biases into one row slab: [b_1 | ... | b_n | b_final]
    bias_pieces, bias_offs, boff = [], [], 0
    for i in range(n_hidden):
        bias_offs.append(boff)
        bias_pieces.append(
            _pad2d(jnp.asarray(biases[i], jnp.float32).reshape(1, -1), 1, pads[i + 1]))
        boff += pads[i + 1]
    bias_offs.append(boff)
    bias_pieces.append(_pad2d(jnp.asarray(b_final, jnp.float32).reshape(1, -1), 1, p_out))
    bias_slab = jnp.concatenate(bias_pieces, axis=1)
    bias_width = int(bias_slab.shape[1])

    # ---- pre-transposed, zero-padded, bf16 weights (y = x @ W)
    w_list = []
    for i in range(n_hidden):
        wt = jnp.asarray(weights[i], jnp.float32).T          # (d_in, d_out)
        w_list.append(_pad2d(wt, pads[i], pads[i + 1]).astype(jnp.bfloat16))
    w_list.append(_pad2d(jnp.asarray(w_final, jnp.float32).T,
                         pads[-1], p_out).astype(jnp.bfloat16))

    # ---- output slab layout: [state_0 | ... | state_n | state_final]
    out_offs, ooff = [], 0
    for i in range(n_hidden + 1):
        out_offs.append(ooff)
        ooff += pads[i]
    out_offs.append(ooff)
    out_width = ooff + p_out

    sqrt_c_in = math.sqrt(float(c_in))
    sqrt_cs = tuple(math.sqrt(float(c)) for c in cs_list)

    kernel = functools.partial(
        _sto_net2_kernel, sqrt_c_in, sqrt_cs, pads, p_out,
        tuple(noise_offs), tuple(bias_offs), tuple(out_offs), n_hidden)

    flops = 2 * B_pad * (sum(pads[i] * pads[i + 1] for i in range(n_hidden))
                         + pads[-1] * p_out)
    bytes_accessed = (in_slab.size * 4 + bias_slab.size * 4
                      + sum(int(w.size) * 2 for w in w_list) + B_pad * out_width * 4)

    grid = (B_pad // b_tile,)
    in_specs = (
        [pl.BlockSpec((b_tile, in_width), lambda b: (b, 0)),
         pl.BlockSpec((1, bias_width), lambda b: (0, 0))]
        + [pl.BlockSpec(tuple(int(s) for s in w.shape), lambda b: (0, 0))
           for w in w_list]
    )
    out_specs = pl.BlockSpec((b_tile, out_width), lambda b: (b, 0))

    # NOTE: at realistic batch sizes, size b_tile against v7x's 64 MiB VMEM
    # (32 MiB scoped default) — here the resident footprint is << 1 MiB.
    out_slab = pl.pallas_call(
        kernel,
        out_shape=jax.ShapeDtypeStruct((B_pad, out_width), jnp.float32),
        grid_spec=pltpu.PrefetchScalarGridSpec(
            num_scalar_prefetch=0,
            grid=grid,
            in_specs=in_specs,
            out_specs=out_specs,
        ),
        compiler_params=pltpu.CompilerParams(
            dimension_semantics=("parallel",)),   # batch grid -> both TCs on v7x
        cost_estimate=pl.CostEstimate(flops=flops, transcendentals=0,
                                      bytes_accessed=bytes_accessed),
    )(in_slab, bias_slab, *w_list)

    # Unpack the lane-dense slab back into the per-state list (strip padding).
    states = []
    for i in range(n_hidden + 1):
        states.append(out_slab[:B, out_offs[i]:out_offs[i] + dims[i]])
    states.append(out_slab[:B, out_offs[-1]:out_offs[-1] + dim_out])
    return states


def _init_linear(key, d_out, d_in):
    """Deterministic PyTorch-style nn.Linear init: U(-1/sqrt(fan_in), 1/sqrt(fan_in))."""
    kw, kb = jax.random.split(key)
    bound = 1.0 / math.sqrt(d_in)
    w = jax.random.uniform(kw, (d_out, d_in), jnp.float32, -bound, bound)
    b = jax.random.uniform(kb, (d_out,), jnp.float32, -bound, bound)
    return w, b


if __name__ == "__main__":
    # Small shapes consistent with the module: 6-entry dim_s (5 hidden linears)
    # plus a final linear to dim_out.
    dim_s = np.array([64, 48, 40, 32, 24, 16])   # dim_in = 64 = 8*8
    dim_out = 10
    B = 8
    n_hidden = dim_s.shape[0] - 1

    C_in = 1.0
    Cs_list = np.array([1.0, 1.0, 1.0, 1.0, 1.0])

    root = jax.random.PRNGKey(0)
    keys = jax.random.split(root, 3 + n_hidden)

    weights, biases = [], []
    for i in range(n_hidden):
        w, b = _init_linear(keys[i], int(dim_s[i + 1]), int(dim_s[i]))
        weights.append(w)
        biases.append(b)
    w_final, b_final = _init_linear(keys[n_hidden], dim_out, int(dim_s[-1]))

    # Input image (NCHW like the PyTorch caller would pass), flattened in wrapper.
    img = jax.random.normal(keys[n_hidden + 1], (B, 1, 8, 8), jnp.float32)

    # Pre-generated Gaussian noise == torch.randn_like(...) for each stochastic state.
    nkeys = jax.random.split(keys[n_hidden + 2], n_hidden + 1)
    noises = [jax.random.normal(nkeys[0], (B, int(dim_s[0])), jnp.float32)]
    for i in range(n_hidden):
        noises.append(jax.random.normal(nkeys[i + 1], (B, int(dim_s[i + 1])), jnp.float32))

    states = sto_net2_forward(img, weights, biases, w_final, b_final,
                              noises, C_in, Cs_list)
    states = [np.asarray(jax.block_until_ready(s)) for s in states]

    # -------- correctness checks --------
    expected_dims = [int(d) for d in dim_s] + [dim_out]
    assert len(states) == len(expected_dims)
    for s, d in zip(states, expected_dims):
        assert s.shape == (B, d), (s.shape, (B, d))
        assert np.all(np.isfinite(s))

    # state_0 is matmul-free: must match exactly.
    ref0 = np.asarray(img).reshape(B, -1) + math.sqrt(C_in) * np.asarray(noises[0])
    np.testing.assert_allclose(states[0], ref0, rtol=1e-6, atol=1e-6)

    def _bf16(a):
        return np.asarray(
            jnp.asarray(a, jnp.float32).astype(jnp.bfloat16).astype(jnp.float32))

    # Hidden states: (state - scaled noise) must be a {0,1} heaviside output and must
    # agree with the sign of the pre-activation recomputed from the previous state
    # (ignoring a tiny band around 0 to allow MXU accumulation-order rounding).
    for i in range(1, n_hidden + 1):
        act = states[i] - math.sqrt(float(Cs_list[i - 1])) * np.asarray(noises[i])
        assert np.max(np.minimum(np.abs(act), np.abs(act - 1.0))) < 1e-5
        z = _bf16(states[i - 1]).astype(np.float64) @ \
            _bf16(np.asarray(weights[i - 1]).T).astype(np.float64)
        z = z + np.asarray(biases[i - 1], np.float64)
        mask = np.abs(z) > 1e-3
        assert np.array_equal((z > 0)[mask], (act > 0.5)[mask])

    # Final linear, recomputed in float64 from the kernel's own last hidden state.
    zf = _bf16(states[-2]).astype(np.float64) @ _bf16(np.asarray(w_final).T).astype(np.float64)
    zf = zf + np.asarray(b_final, np.float64)
    np.testing.assert_allclose(states[-1], zf, rtol=5e-4, atol=5e-4)

    print("KERNEL_OK")
</pallas_src>

<mosaic_0001>
module attributes {stable_mosaic.version = 11 : i64} {
  func.func @_sto_net2_kernel(%arg0: i32, %arg1: memref<8x896xf32, #tpu.memory_space<vmem>>, %arg2: memref<1x768xf32, #tpu.memory_space<vmem>>, %arg3: memref<128x128xbf16, #tpu.memory_space<vmem>>, %arg4: memref<128x128xbf16, #tpu.memory_space<vmem>>, %arg5: memref<128x128xbf16, #tpu.memory_space<vmem>>, %arg6: memref<128x128xbf16, #tpu.memory_space<vmem>>, %arg7: memref<128x128xbf16, #tpu.memory_space<vmem>>, %arg8: memref<128x128xbf16, #tpu.memory_space<vmem>>, %arg9: memref<8x896xf32, #tpu.memory_space<vmem>>) attributes {dimension_semantics = [#tpu.dimension_semantics<parallel>], iteration_bounds = array<i64: 1>, scalar_prefetch = 0 : i64, scratch_operands = 0 : i64, tpu.core_type = #tpu.core_type<tc>, window_params = [{transform_indices = @transform_0, window_bounds = array<i64: 8, 896>}, {pipeline_mode = #tpu.pipeline_mode<synchronous>, transform_indices = @transform_1, window_bounds = array<i64: 1, 768>}, {pipeline_mode = #tpu.pipeline_mode<synchronous>, transform_indices = @transform_2, window_bounds = array<i64: 128, 128>}, {pipeline_mode = #tpu.pipeline_mode<synchronous>, transform_indices = @transform_3, window_bounds = array<i64: 128, 128>}, {pipeline_mode = #tpu.pipeline_mode<synchronous>, transform_indices = @transform_4, window_bounds = array<i64: 128, 128>}, {pipeline_mode = #tpu.pipeline_mode<synchronous>, transform_indices = @transform_5, window_bounds = array<i64: 128, 128>}, {pipeline_mode = #tpu.pipeline_mode<synchronous>, transform_indices = @transform_6, window_bounds = array<i64: 128, 128>}, {pipeline_mode = #tpu.pipeline_mode<synchronous>, transform_indices = @transform_7, window_bounds = array<i64: 128, 128>}, {transform_indices = @transform_8, window_bounds = array<i64: 8, 896>}]} {
    %c0 = arith.constant 0 : index
    %c0_0 = arith.constant 0 : index
    %0 = vector.load %arg1[%c0, %c0_0] : memref<8x896xf32, #tpu.memory_space<vmem>>, vector<8x128xf32>
    %c0_1 = arith.constant 0 : index
    %c128 = arith.constant 128 : index
    %1 = vector.load %arg1[%c0_1, %c128] : memref<8x896xf32, #tpu.memory_space<vmem>>, vector<8x128xf32>
    %cst = arith.constant 1.000000e+00 : f32
    %2 = vector.broadcast %cst : f32 to vector<8x128xf32>
    %3 = arith.mulf %2, %1 : vector<8x128xf32>
    %4 = arith.addf %0, %3 : vector<8x128xf32>
    %c0_2 = arith.constant 0 : index
    %c0_3 = arith.constant 0 : index
    %5 = vector.load %arg9[%c0_2, %c0_3] : memref<8x896xf32, #tpu.memory_space<vmem>>, vector<8x128xf32>
    tpu.vector_store %arg9[%c0_2, %c0_3], %4 {strides = array<i32>} : memref<8x896xf32, #tpu.memory_space<vmem>>, vector<8x128xf32>,
    %6 = arith.truncf %4 : vector<8x128xf32> to vector<8x128xbf16>
    %c0_4 = arith.constant 0 : index
    %c0_5 = arith.constant 0 : index
    %7 = vector.load %arg3[%c0_4, %c0_5] : memref<128x128xbf16, #tpu.memory_space<vmem>>, vector<128x128xbf16>
    %cst_6 = arith.constant dense<0.000000e+00> : vector<8x128xf32>
    %8 = tpu.matmul %6, %7, %cst_6 {dimension_numbers = #tpu.dot_dimension_numbers<[1], [0], [0], [1], [0, 0, 1, 1], [], []>} : vector<8x128xbf16>, vector<128x128xbf16>, vector<8x128xf32> -> vector<8x128xf32>
    %c0_7 = arith.constant 0 : index
    %c0_8 = arith.constant 0 : index
    %9 = vector.load %arg2[%c0_7, %c0_8] : memref<1x768xf32, #tpu.memory_space<vmem>>, vector<1x128xf32>
    %10 = vector.broadcast %9 : vector<1x128xf32> to vector<8x128xf32>
    %11 = arith.addf %8, %10 : vector<8x128xf32>
    %cst_9 = arith.constant 0.000000e+00 : f32
    %12 = vector.broadcast %cst_9 : f32 to vector<8x128xf32>
    %13 = arith.cmpf ogt, %11, %12 : vector<8x128xf32>
    %14 = arith.extui %13 : vector<8x128xi1> to vector<8x128xi32>
    %15 = arith.sitofp %14 : vector<8x128xi32> to vector<8x128xf32>
    %c0_10 = arith.constant 0 : index
    %c256 = arith.constant 256 : index
    %16 = vector.load %arg1[%c0_10, %c256] : memref<8x896xf32, #tpu.memory_space<vmem>>, vector<8x128xf32>
    %cst_11 = arith.constant 1.000000e+00 : f32
    %17 = vector.broadcast %cst_11 : f32 to vector<8x128xf32>
    %18 = arith.mulf %17, %16 : vector<8x128xf32>
    %19 = arith.addf %15, %18 : vector<8x128xf32>
    %c0_12 = arith.constant 0 : index
    %c128_13 = arith.constant 128 : index
    %20 = vector.load %arg9[%c0_12, %c128_13] : memref<8x896xf32, #tpu.memory_space<vmem>>, vector<8x128xf32>
    tpu.vector_store %arg9[%c0_12, %c128_13], %19 {strides = array<i32>} : memref<8x896xf32, #tpu.memory_space<vmem>>, vector<8x128xf32>,
    %21 = arith.truncf %19 : vector<8x128xf32> to vector<8x128xbf16>
    %c0_14 = arith.constant 0 : index
    %c0_15 = arith.constant 0 : index
    %22 = vector.load %arg4[%c0_14, %c0_15] : memref<128x128xbf16, #tpu.memory_space<vmem>>, vector<128x128xbf16>
    %cst_16 = arith.constant dense<0.000000e+00> : vector<8x128xf32>
    %23 = tpu.matmul %21, %22, %cst_16 {dimension_numbers = #tpu.dot_dimension_numbers<[1], [0], [0], [1], [0, 0, 1, 1], [], []>} : vector<8x128xbf16>, vector<128x128xbf16>, vector<8x128xf32> -> vector<8x128xf32>
    %c0_17 = arith.constant 0 : index
    %c128_18 = arith.constant 128 : index
    %24 = vector.load %arg2[%c0_17, %c128_18] : memref<1x768xf32, #tpu.memory_space<vmem>>, vector<1x128xf32>
    %25 = vector.broadcast %24 : vector<1x128xf32> to vector<8x128xf32>
    %26 = arith.addf %23, %25 : vector<8x128xf32>
    %cst_19 = arith.constant 0.000000e+00 : f32
    %27 = vector.broadcast %cst_19 : f32 to vector<8x128xf32>
    %28 = arith.cmpf ogt, %26, %27 : vector<8x128xf32>
    %29 = arith.extui %28 : vector<8x128xi1> to vector<8x128xi32>
    %30 = arith.sitofp %29 : vector<8x128xi32> to vector<8x128xf32>
    %c0_20 = arith.constant 0 : index
    %c384 = arith.constant 384 : index
    %31 = vector.load %arg1[%c0_20, %c384] : memref<8x896xf32, #tpu.memory_space<vmem>>, vector<8x128xf32>
    %cst_21 = arith.constant 1.000000e+00 : f32
    %32 = vector.broadcast %cst_21 : f32 to vector<8x128xf32>
    %33 = arith.mulf %32, %31 : vector<8x128xf32>
    %34 = arith.addf %30, %33 : vector<8x128xf32>
    %c0_22 = arith.constant 0 : index
    %c256_23 = arith.constant 256 : index
    %35 = vector.load %arg9[%c0_22, %c256_23] : memref<8x896xf32, #tpu.memory_space<vmem>>, vector<8x128xf32>
    tpu.vector_store %arg9[%c0_22, %c256_23], %34 {strides = array<i32>} : memref<8x896xf32, #tpu.memory_space<vmem>>, vector<8x128xf32>,
    %36 = arith.truncf %34 : vector<8x128xf32> to vector<8x128xbf16>
    %c0_24 = arith.constant 0 : index
    %c0_25 = arith.constant 0 : index
    %37 = vector.load %arg5[%c0_24, %c0_25] : memref<128x128xbf16, #tpu.memory_space<vmem>>, vector<128x128xbf16>
    %cst_26 = arith.constant dense<0.000000e+00> : vector<8x128xf32>
    %38 = tpu.matmul %36, %37, %cst_26 {dimension_numbers = #tpu.dot_dimension_numbers<[1], [0], [0], [1], [0, 0, 1, 1], [], []>} : vector<8x128xbf16>, vector<128x128xbf16>, vector<8x128xf32> -> vector<8x128xf32>
    %c0_27 = arith.constant 0 : index
    %c256_28 = arith.constant 256 : index
    %39 = vector.load %arg2[%c0_27, %c256_28] : memref<1x768xf32, #tpu.memory_space<vmem>>, vector<1x128xf32>
    %40 = vector.broadcast %39 : vector<1x128xf32> to vector<8x128xf32>
    %41 = arith.addf %38, %40 : vector<8x128xf32>
    %cst_29 = arith.constant 0.000000e+00 : f32
    %42 = vector.broadcast %cst_29 : f32 to vector<8x128xf32>
    %43 = arith.cmpf ogt, %41, %42 : vector<8x128xf32>
    %44 = arith.extui %43 : vector<8x128xi1> to vector<8x128xi32>
    %45 = arith.sitofp %44 : vector<8x128xi32> to vector<8x128xf32>
    %c0_30 = arith.constant 0 : index
    %c512 = arith.constant 512 : index
    %46 = vector.load %arg1[%c0_30, %c512] : memref<8x896xf32, #tpu.memory_space<vmem>>, vector<8x128xf32>
    %cst_31 = arith.constant 1.000000e+00 : f32
    %47 = vector.broadcast %cst_31 : f32 to vector<8x128xf32>
    %48 = arith.mulf %47, %46 : vector<8x128xf32>
    %49 = arith.addf %45, %48 : vector<8x128xf32>
    %c0_32 = arith.constant 0 : index
    %c384_33 = arith.constant 384 : index
    %50 = vector.load %arg9[%c0_32, %c384_33] : memref<8x896xf32, #tpu.memory_space<vmem>>, vector<8x128xf32>
    tpu.vector_store %arg9[%c0_32, %c384_33], %49 {strides = array<i32>} : memref<8x896xf32, #tpu.memory_space<vmem>>, vector<8x128xf32>,
    %51 = arith.truncf %49 : vector<8x128xf32> to vector<8x128xbf16>
    %c0_34 = arith.constant 0 : index
    %c0_35 = arith.constant 0 : index
    %52 = vector.load %arg6[%c0_34, %c0_35] : memref<128x128xbf16, #tpu.memory_space<vmem>>, vector<128x128xbf16>
    %cst_36 = arith.constant dense<0.000000e+00> : vector<8x128xf32>
    %53 = tpu.matmul %51, %52, %cst_36 {dimension_numbers = #tpu.dot_dimension_numbers<[1], [0], [0], [1], [0, 0, 1, 1], [], []>} : vector<8x128xbf16>, vector<128x128xbf16>, vector<8x128xf32> -> vector<8x128xf32>
    %c0_37 = arith.constant 0 : index
    %c384_38 = arith.constant 384 : index
    %54 = vector.load %arg2[%c0_37, %c384_38] : memref<1x768xf32, #tpu.memory_space<vmem>>, vector<1x128xf32>
    %55 = vector.broadcast %54 : vector<1x128xf32> to vector<8x128xf32>
    %56 = arith.addf %53, %55 : vector<8x128xf32>
    %cst_39 = arith.constant 0.000000e+00 : f32
    %57 = vector.broadcast %cst_39 : f32 to vector<8x128xf32>
    %58 = arith.cmpf ogt, %56, %57 : vector<8x128xf32>
    %59 = arith.extui %58 : vector<8x128xi1> to vector<8x128xi32>
    %60 = arith.sitofp %59 : vector<8x128xi32> to vector<8x128xf32>
    %c0_40 = arith.constant 0 : index
    %c640 = arith.constant 640 : index
    %61 = vector.load %arg1[%c0_40, %c640] : memref<8x896xf32, #tpu.memory_space<vmem>>, vector<8x128xf32>
    %cst_41 = arith.constant 1.000000e+00 : f32
    %62 = vector.broadcast %cst_41 : f32 to vector<8x128xf32>
    %63 = arith.mulf %62, %61 : vector<8x128xf32>
    %64 = arith.addf %60, %63 : vector<8x128xf32>
    %c0_42 = arith.constant 0 : index
    %c512_43 = arith.constant 512 : index
    %65 = vector.load %arg9[%c0_42, %c512_43] : memref<8x896xf32, #tpu.memory_space<vmem>>, vector<8x128xf32>
    tpu.vector_store %arg9[%c0_42, %c512_43], %64 {strides = array<i32>} : memref<8x896xf32, #tpu.memory_space<vmem>>, vector<8x128xf32>,
    %66 = arith.truncf %64 : vector<8x128xf32> to vector<8x128xbf16>
    %c0_44 = arith.constant 0 : index
    %c0_45 = arith.constant 0 : index
    %67 = vector.load %arg7[%c0_44, %c0_45] : memref<128x128xbf16, #tpu.memory_space<vmem>>, vector<128x128xbf16>
    %cst_46 = arith.constant dense<0.000000e+00> : vector<8x128xf32>
    %68 = tpu.matmul %66, %67, %cst_46 {dimension_numbers = #tpu.dot_dimension_numbers<[1], [0], [0], [1], [0, 0, 1, 1], [], []>} : vector<8x128xbf16>, vector<128x128xbf16>, vector<8x128xf32> -> vector<8x128xf32>
    %c0_47 = arith.constant 0 : index
    %c512_48 = arith.constant 512 : index
    %69 = vector.load %arg2[%c0_47, %c512_48] : memref<1x768xf32, #tpu.memory_space<vmem>>, vector<1x128xf32>
    %70 = vector.broadcast %69 : vector<1x128xf32> to vector<8x128xf32>
    %71 = arith.addf %68, %70 : vector<8x128xf32>
    %cst_49 = arith.constant 0.000000e+00 : f32
    %72 = vector.broadcast %cst_49 : f32 to vector<8x128xf32>
    %73 = arith.cmpf ogt, %71, %72 : vector<8x128xf32>
    %74 = arith.extui %73 : vector<8x128xi1> to vector<8x128xi32>
    %75 = arith.sitofp %74 : vector<8x128xi32> to vector<8x128xf32>
    %c0_50 = arith.constant 0 : index
    %c768 = arith.constant 768 : index
    %76 = vector.load %arg1[%c0_50, %c768] : memref<8x896xf32, #tpu.memory_space<vmem>>, vector<8x128xf32>
    %cst_51 = arith.constant 1.000000e+00 : f32
    %77 = vector.broadcast %cst_51 : f32 to vector<8x128xf32>
    %78 = arith.mulf %77, %76 : vector<8x128xf32>
    %79 = arith.addf %75, %78 : vector<8x128xf32>
    %c0_52 = arith.constant 0 : index
    %c640_53 = arith.constant 640 : index
    %80 = vector.load %arg9[%c0_52, %c640_53] : memref<8x896xf32, #tpu.memory_space<vmem>>, vector<8x128xf32>
    tpu.vector_store %arg9[%c0_52, %c640_53], %79 {strides = array<i32>} : memref<8x896xf32, #tpu.memory_space<vmem>>, vector<8x128xf32>,
    %81 = arith.truncf %79 : vector<8x128xf32> to vector<8x128xbf16>
    %c0_54 = arith.constant 0 : index
    %c0_55 = arith.constant 0 : index
    %82 = vector.load %arg8[%c0_54, %c0_55] : memref<128x128xbf16, #tpu.memory_space<vmem>>, vector<128x128xbf16>
    %cst_56 = arith.constant dense<0.000000e+00> : vector<8x128xf32>
    %83 = tpu.matmul %81, %82, %cst_56 {dimension_numbers = #tpu.dot_dimension_numbers<[1], [0], [0], [1], [0, 0, 1, 1], [], []>} : vector<8x128xbf16>, vector<128x128xbf16>, vector<8x128xf32> -> vector<8x128xf32>
    %c0_57 = arith.constant 0 : index
    %c640_58 = arith.constant 640 : index
    %84 = vector.load %arg2[%c0_57, %c640_58] : memref<1x768xf32, #tpu.memory_space<vmem>>, vector<1x128xf32>
    %85 = vector.broadcast %84 : vector<1x128xf32> to vector<8x128xf32>
    %86 = arith.addf %83, %85 : vector<8x128xf32>
    %c0_59 = arith.constant 0 : index
    %c768_60 = arith.constant 768 : index
    %87 = vector.load %arg9[%c0_59, %c768_60] : memref<8x896xf32, #tpu.memory_space<vmem>>, vector<8x128xf32>
    tpu.vector_store %arg9[%c0_59, %c768_60], %86 {strides = array<i32>} : memref<8x896xf32, #tpu.memory_space<vmem>>, vector<8x128xf32>,
    return
  }
  func.func @transform_0(%arg0: i32) -> (i32, i32) {
    %c0_i32 = arith.constant 0 : i32
    %c0_i32_0 = arith.constant 0 : i32
    return %arg0, %c0_i32 : i32, i32
  }
  func.func @transform_1(%arg0: i32) -> (i32, i32) {
    %c0_i32 = arith.constant 0 : i32
    %c0_i32_0 = arith.constant 0 : i32
    %c0_i32_1 = arith.constant 0 : i32
    return %c0_i32, %c0_i32_0 : i32, i32
  }
  func.func @transform_2(%arg0: i32) -> (i32, i32) {
    %c0_i32 = arith.constant 0 : i32
    %c0_i32_0 = arith.constant 0 : i32
    %c0_i32_1 = arith.constant 0 : i32
    return %c0_i32, %c0_i32_0 : i32, i32
  }
  func.func @transform_3(%arg0: i32) -> (i32, i32) {
    %c0_i32 = arith.constant 0 : i32
    %c0_i32_0 = arith.constant 0 : i32
    %c0_i32_1 = arith.constant 0 : i32
    return %c0_i32, %c0_i32_0 : i32, i32
  }
  func.func @transform_4(%arg0: i32) -> (i32, i32) {
    %c0_i32 = arith.constant 0 : i32
    %c0_i32_0 = arith.constant 0 : i32
    %c0_i32_1 = arith.constant 0 : i32
    return %c0_i32, %c0_i32_0 : i32, i32
  }
  func.func @transform_5(%arg0: i32) -> (i32, i32) {
    %c0_i32 = arith.constant 0 : i32
    %c0_i32_0 = arith.constant 0 : i32
    %c0_i32_1 = arith.constant 0 : i32
    return %c0_i32, %c0_i32_0 : i32, i32
  }
  func.func @transform_6(%arg0: i32) -> (i32, i32) {
    %c0_i32 = arith.constant 0 : i32
    %c0_i32_0 = arith.constant 0 : i32
    %c0_i32_1 = arith.constant 0 : i32
    return %c0_i32, %c0_i32_0 : i32, i32
  }
  func.func @transform_7(%arg0: i32) -> (i32, i32) {
    %c0_i32 = arith.constant 0 : i32
    %c0_i32_0 = arith.constant 0 : i32
    %c0_i32_1 = arith.constant 0 : i32
    return %c0_i32, %c0_i32_0 : i32, i32
  }
  func.func @transform_8(%arg0: i32) -> (i32, i32) {
    %c0_i32 = arith.constant 0 : i32
    %c0_i32_0 = arith.constant 0 : i32
    return %arg0, %c0_i32 : i32, i32
  }
}

</mosaic_0001>

<llo_original>
// kernel: tpu_custom_call.1
$region0: #{tpu_custom_call.1}
  #allocation0 [shape = 'u32[]', space=smem, size = 0x4, offset = 0x4, fixed_abs, tag = 'smem constant byte address 0x4 - core index']
  #allocation1 [shape = 'u32[144,128]{1,0:T(1,128)}', space=vmem, size = 0x12000, scoped, tag = 'internal scratch']
  %s0 = inlined_call_operand.hbm [shape: f32[8,896], index: 0, kind: input, shape index: {}]
  %s1 = inlined_call_operand.hbm [shape: f32[1,768], index: 1, kind: input, shape index: {}]
  %s2 = inlined_call_operand.hbm [shape: bf16[128,128], index: 2, kind: input, shape index: {}]
  %s3 = inlined_call_operand.hbm [shape: bf16[128,128], index: 3, kind: input, shape index: {}]
  %s4 = inlined_call_operand.hbm [shape: bf16[128,128], index: 4, kind: input, shape index: {}]
  %s5 = inlined_call_operand.hbm [shape: bf16[128,128], index: 5, kind: input, shape index: {}]
  %s6 = inlined_call_operand.hbm [shape: bf16[128,128], index: 6, kind: input, shape index: {}]
  %s7 = inlined_call_operand.hbm [shape: bf16[128,128], index: 7, kind: input, shape index: {}]
  %s8 = inlined_call_operand.hbm [shape: f32[8,896], index: 8, kind: output, shape index: {}]
  %s9 = sld [smem:[#allocation0]]
  $region74: #{tpu_custom_call.1} parent=0
    _
  %s11 = ssub.s32 1, %s9
  %s12 = scalar_select 0, %s11, %s9
  $region1: #{tpu_custom_call.1} parent=0
    #allocation2 [shape = 'u8[28672]{0}', space=vmem, size = 0x7000, scoped, tag = 'input window, operand 0, single buffered']
    #allocation3 [shape = 's32[1]{0}', space=sflag, size = 0x4, scoped, tag = 'scoped memory for tpu_custom_call.1']
    #allocation4 [shape = 's32[1]{0}', space=sflag, size = 0x4, scoped, tag = 'scoped memory for tpu_custom_call.1']
    #allocation5 [shape = 'u8[3072]{0}', space=vmem, size = 0xc00, scoped, tag = 'input window, operand 1, single buffered']
    #allocation6 [shape = 's32[1]{0}', space=sflag, size = 0x4, scoped, tag = 'scoped memory for tpu_custom_call.1']
    #allocation7 [shape = 'u8[32768]{0}', space=vmem, size = 0x8000, scoped, tag = 'input window, operand 2, single buffered']
    #allocation8 [shape = 'u8[32768]{0}', space=vmem, size = 0x8000, scoped, tag = 'input window, operand 3, single buffered']
    #allocation9 [shape = 's32[1]{0}', space=sflag, size = 0x4, scoped, tag = 'scoped memory for tpu_custom_call.1']
    #allocation10 [shape = 'u8[32768]{0}', space=vmem, size = 0x8000, scoped, tag = 'input window, operand 4, single buffered']
    #allocation11 [shape = 'u8[32768]{0}', space=vmem, size = 0x8000, scoped, tag = 'input window, operand 5, single buffered']
    #allocation12 [shape = 's32[1]{0}', space=sflag, size = 0x4, scoped, tag = 'scoped memory for tpu_custom_call.1']
    #allocation13 [shape = 'u8[32768]{0}', space=vmem, size = 0x8000, scoped, tag = 'input window, operand 6, single buffered']
    #allocation14 [shape = 'u8[32768]{0}', space=vmem, size = 0x8000, scoped, tag = 'input window, operand 7, single buffered']
    #allocation15 [shape = 's32[1]{0}', space=sflag, size = 0x4, scoped, tag = 'scoped memory for tpu_custom_call.1']
    #allocation16 [shape = 'u8[28672]{0}', space=vmem, size = 0x7000, scoped, tag = 'output window, operand 0, single buffered']
    %13 = vsyncpa [#allocation3], 0
    %14 = vsyncpa [#allocation6], 0
    %15 = vsyncpa [#allocation9], 0
    %16 = vsyncpa [#allocation12], 0
    %17 = vsyncpa [#allocation15], 0
    %18 = vsyncpa [#allocation4], 0
    // Predicated region
    $region2: #{tpu_custom_call.1} parent=1 // pred_check
      _
    $region3: #{tpu_custom_call.1} parent=1 // pred_check_branch
      %20 = sbr.rel (0) target = $region5
    $region4: #{tpu_custom_call.1} parent=1 // pred_region
      %s22 = ssub.s32 896, 896
      %23 = vsyncadd [#allocation3], %s22
      %s25 = sshll.u32 [#allocation2], 4
      %s26 = int_to_ptr.vmem [resolvable:$true] %s25
      %28 = dma.hbm_to_vmem [thread:$0]  %s0, 896, %s26, [#allocation3]
    $region5: #{tpu_custom_call.1} parent=1 // pred_fallthru
      _
    // Predicated region
    $region6: #{tpu_custom_call.1} parent=1 // pred_check
      _
    $region7: #{tpu_custom_call.1} parent=1 // pred_check_branch
      %30 = sbr.rel (0) target = $region9
    $region8: #{tpu_custom_call.1} parent=1 // pred_region
      %s32 = ssub.s32 96, 96
      %33 = vsyncadd [#allocation6], %s32
      %s35 = sshll.u32 [#allocation5], 4
      %s36 = int_to_ptr.vmem [resolvable:$true] %s35
      %38 = dma.hbm_to_vmem [thread:$0]  %s1, 96, %s36, [#allocation6]
    $region9: #{tpu_custom_call.1} parent=1 // pred_fallthru
      _
    // Predicated region
    $region10: #{tpu_custom_call.1} parent=1 // pred_check
      _
    $region11: #{tpu_custom_call.1} parent=1 // pred_check_branch
      %40 = sbr.rel (0) target = $region13
    $region12: #{tpu_custom_call.1} parent=1 // pred_region
      %s42 = ssub.s32 1024, 1024
      %43 = vsyncadd [#allocation6], %s42
      %s44 = sshll.u32 [#allocation7], 4
      %s45 = int_to_ptr.vmem [resolvable:$true] %s44
      %50 = dma.hbm_to_vmem [thread:$0]  %s2, 1024, %s45, [#allocation6], 64, 64, 4
    $region13: #{tpu_custom_call.1} parent=1 // pred_fallthru
      _
    // Predicated region
    $region14: #{tpu_custom_call.1} parent=1 // pred_check
      _
    $region15: #{tpu_custom_call.1} parent=1 // pred_check_branch
      %52 = sbr.rel (0) target = $region17
    $region16: #{tpu_custom_call.1} parent=1 // pred_region
      %s54 = ssub.s32 1024, 1024
      %55 = vsyncadd [#allocation9], %s54
      %s56 = sshll.u32 [#allocation8], 4
      %s57 = int_to_ptr.vmem [resolvable:$true] %s56
      %62 = dma.hbm_to_vmem [thread:$0]  %s3, 1024, %s57, [#allocation9], 64, 64, 4
    $region17: #{tpu_custom_call.1} parent=1 // pred_fallthru
      _
    // Predicated region
    $region18: #{tpu_custom_call.1} parent=1 // pred_check
      _
    $region19: #{tpu_custom_call.1} parent=1 // pred_check_branch
      %64 = sbr.rel (0) target = $region21
    $region20: #{tpu_custom_call.1} parent=1 // pred_region
      %s66 = ssub.s32 1024, 1024
      %67 = vsyncadd [#allocation9], %s66
      %s68 = sshll.u32 [#allocation10], 4
      %s69 = int_to_ptr.vmem [resolvable:$true] %s68
      %74 = dma.hbm_to_vmem [thread:$0]  %s4, 1024, %s69, [#allocation9], 64, 64, 4
    $region21: #{tpu_custom_call.1} parent=1 // pred_fallthru
      _
    // Predicated region
    $region22: #{tpu_custom_call.1} parent=1 // pred_check
      _
    $region23: #{tpu_custom_call.1} parent=1 // pred_check_branch
      %76 = sbr.rel (0) target = $region25
    $region24: #{tpu_custom_call.1} parent=1 // pred_region
      %s78 = ssub.s32 1024, 1024
      %79 = vsyncadd [#allocation12], %s78
      %s80 = sshll.u32 [#allocation11], 4
      %s81 = int_to_ptr.vmem [resolvable:$true] %s80
      %86 = dma.hbm_to_vmem [thread:$0]  %s5, 1024, %s81, [#allocation12], 64, 64, 4
    $region25: #{tpu_custom_call.1} parent=1 // pred_fallthru
      _
    // Predicated region
    $region26: #{tpu_custom_call.1} parent=1 // pred_check
      _
    $region27: #{tpu_custom_call.1} parent=1 // pred_check_branch
      %88 = sbr.rel (0) target = $region29
    $region28: #{tpu_custom_call.1} parent=1 // pred_region
      %s90 = ssub.s32 1024, 1024
      %91 = vsyncadd [#allocation12], %s90
      %s92 = sshll.u32 [#allocation13], 4
      %s93 = int_to_ptr.vmem [resolvable:$true] %s92
      %98 = dma.hbm_to_vmem [thread:$0]  %s6, 1024, %s93, [#allocation12], 64, 64, 4
    $region29: #{tpu_custom_call.1} parent=1 // pred_fallthru
      _
    // Predicated region
    $region30: #{tpu_custom_call.1} parent=1 // pred_check
      _
    $region31: #{tpu_custom_call.1} parent=1 // pred_check_branch
      %100 = sbr.rel (0) target = $region33
    $region32: #{tpu_custom_call.1} parent=1 // pred_region
      %s102 = ssub.s32 1024, 1024
      %103 = vsyncadd [#allocation15], %s102
      %s104 = sshll.u32 [#allocation14], 4
      %s105 = int_to_ptr.vmem [resolvable:$true] %s104
      %110 = dma.hbm_to_vmem [thread:$0]  %s7, 1024, %s105, [#allocation15], 64, 64, 4
    $region33: #{tpu_custom_call.1} parent=1 // pred_fallthru
      _
    // Predicated region
    $region34: #{tpu_custom_call.1} parent=1 // pred_check
      _
    $region35: #{tpu_custom_call.1} parent=1 // pred_check_branch
      %112 = sbr.rel (0) target = $region37
    $region36: #{tpu_custom_call.1} parent=1 // pred_region
      %113 = dma.done [#allocation3], 896
    $region37: #{tpu_custom_call.1} parent=1 // pred_fallthru
      _
    // Predicated region
    $region38: #{tpu_custom_call.1} parent=1 // pred_check
      _
    $region39: #{tpu_custom_call.1} parent=1 // pred_check_branch
      %115 = sbr.rel (0) target = $region41
    $region40: #{tpu_custom_call.1} parent=1 // pred_region
      %116 = dma.done [#allocation6], 96
    $region41: #{tpu_custom_call.1} parent=1 // pred_fallthru
      _
    // Predicated region
    $region42: #{tpu_custom_call.1} parent=1 // pred_check
      _
    $region43: #{tpu_custom_call.1} parent=1 // pred_check_branch
      %118 = sbr.rel (0) target = $region45
    $region44: #{tpu_custom_call.1} parent=1 // pred_region
      %119 = dma.done [#allocation6], 1024
    $region45: #{tpu_custom_call.1} parent=1 // pred_fallthru
      _
    // Predicated region
    $region46: #{tpu_custom_call.1} parent=1 // pred_check
      _
    $region47: #{tpu_custom_call.1} parent=1 // pred_check_branch
      %121 = sbr.rel (0) target = $region49
    $region48: #{tpu_custom_call.1} parent=1 // pred_region
      %122 = dma.done [#allocation9], 1024
    $region49: #{tpu_custom_call.1} parent=1 // pred_fallthru
      _
    // Predicated region
    $region50: #{tpu_custom_call.1} parent=1 // pred_check
      _
    $region51: #{tpu_custom_call.1} parent=1 // pred_check_branch
      %124 = sbr.rel (0) target = $region53
    $region52: #{tpu_custom_call.1} parent=1 // pred_region
      %125 = dma.done [#allocation9], 1024
    $region53: #{tpu_custom_call.1} parent=1 // pred_fallthru
      _
    // Predicated region
    $region54: #{tpu_custom_call.1} parent=1 // pred_check
      _
    $region55: #{tpu_custom_call.1} parent=1 // pred_check_branch
      %127 = sbr.rel (0) target = $region57
    $region56: #{tpu_custom_call.1} parent=1 // pred_region
      %128 = dma.done [#allocation12], 1024
    $region57: #{tpu_custom_call.1} parent=1 // pred_fallthru
      _
    // Predicated region
    $region58: #{tpu_custom_call.1} parent=1 // pred_check
      _
    $region59: #{tpu_custom_call.1} parent=1 // pred_check_branch
      %130 = sbr.rel (0) target = $region61
    $region60: #{tpu_custom_call.1} parent=1 // pred_region
      %131 = dma.done [#allocation12], 1024
    $region61: #{tpu_custom_call.1} parent=1 // pred_fallthru
      _
    // Predicated region
    $region62: #{tpu_custom_call.1} parent=1 // pred_check
      _
    $region63: #{tpu_custom_call.1} parent=1 // pred_check_branch
      %133 = sbr.rel (0) target = $region65
    $region64: #{tpu_custom_call.1} parent=1 // pred_region
      %134 = dma.done [#allocation15], 1024
    $region65: #{tpu_custom_call.1} parent=1 // pred_fallthru
      _
    %v136 = vld [vmem:[#allocation2] sm:$0xff]
    %v137 = vld [vmem:[#allocation2 + $0x8] sm:$0xff]
    %v138 = vadd.f32 %v136, %v137
    %139 = vst [vmem:[#allocation16] sm:$0xff] %v138
    %v140 = vpack.c.bf16 %v138, %v138
    %v141 = vld [vmem:[#allocation7] sm:$0xf]
    %v142 = vld [vmem:[#allocation7 + $0x4] sm:$0xf]
    %v143 = vld [vmem:[#allocation7 + $0x8] sm:$0xf]
    %v144 = vld [vmem:[#allocation7 + $0xc] sm:$0xf]
    %v145 = vld [vmem:[#allocation7 + $0x10] sm:$0xf]
    %v146 = vld [vmem:[#allocation7 + $0x14] sm:$0xf]
    %v147 = vld [vmem:[#allocation7 + $0x18] sm:$0xf]
    %v148 = vld [vmem:[#allocation7 + $0x1c] sm:$0xf]
    %v149 = vld [vmem:[#allocation7 + $0x20] sm:$0xf]
    %v150 = vld [vmem:[#allocation7 + $0x24] sm:$0xf]
    %v151 = vld [vmem:[#allocation7 + $0x28] sm:$0xf]
    %v152 = vld [vmem:[#allocation7 + $0x2c] sm:$0xf]
    %v153 = vld [vmem:[#allocation7 + $0x30] sm:$0xf]
    %v154 = vld [vmem:[#allocation7 + $0x34] sm:$0xf]
    %v155 = vld [vmem:[#allocation7 + $0x38] sm:$0xf]
    %v156 = vld [vmem:[#allocation7 + $0x3c] sm:$0xf]
    %v157 = vld [vmem:[#allocation5] sm:$0x1]
    %v159 = vlaneseq
    %v160 = vshrl.u32 %v159, 7
    %v161 = vsub.s32 0, %v160
    %v162 = vrot.slane %v157, %v161
    %v180 = vunpack.c.l.b16 %v141
    %v181 = vunpack.c.l.b16 %v142
    %v182 = vunpack.c.l.b16 %v143
    %v183 = vunpack.c.l.b16 %v144
    %v184 = vunpack.c.l.b16 %v145
    %v185 = vunpack.c.l.b16 %v146
    %v186 = vunpack.c.l.b16 %v147
    %v187 = vunpack.c.l.b16 %v148
    %v188 = vunpack.c.l.b16 %v149
    %v189 = vunpack.c.l.b16 %v150
    %v190 = vunpack.c.l.b16 %v151
    %v191 = vunpack.c.l.b16 %v152
    %v192 = vunpack.c.l.b16 %v153
    %v193 = vunpack.c.l.b16 %v154
    %v194 = vunpack.c.l.b16 %v155
    %v195 = vunpack.c.l.b16 %v156
    %v196 = vpack.c.b16 %v181, %v180
    %v197 = vpack.c.b16 %v183, %v182
    %v198 = vpack.c.b16 %v185, %v184
    %v199 = vpack.c.b16 %v187, %v186
    %v200 = vpack.c.b16 %v189, %v188
    %v201 = vpack.c.b16 %v191, %v190
    %v202 = vpack.c.b16 %v193, %v192
    %v203 = vpack.c.b16 %v195, %v194
    %212 = vmatprep.subr.bf16.mxu0 0
    %213 = vmatpush1.bf16.msra.mxu0 %v196
    %214 = vmatprep.subr.bf16.mxu0 0
    %215 = vmatpush1.bf16.msra.mxu0 %v197
    %216 = vmatprep.subr.bf16.mxu0 0
    %217 = vmatpush1.bf16.msra.mxu0 %v198
    %218 = vmatprep.subr.bf16.mxu0 0
    %219 = vmatpush1.bf16.msra.mxu0 %v199
    %220 = vmatprep.subr.bf16.mxu0 0
    %221 = vmatpush1.bf16.msra.mxu0 %v200
    %222 = vmatprep.subr.bf16.mxu0 0
    %223 = vmatpush1.bf16.msra.mxu0 %v201
    %224 = vmatprep.subr.bf16.mxu0 0
    %225 = vmatpush1.bf16.msra.mxu0 %v202
    %226 = vmatprep.subr.bf16.mxu0 0
    %227 = vmatpush1.bf16.msra.mxu0 %v203
    %228 = vmatprep.subr.bf16.mxu0 0
    %229 = vmatpush1.bf16.msra.mxu0 0
    %230 = vmatprep.subr.bf16.mxu0 0
    %231 = vmatpush1.bf16.msra.mxu0 0
    %232 = vmatprep.subr.bf16.mxu0 0
    %233 = vmatpush1.bf16.msra.mxu0 0
    %234 = vmatprep.subr.bf16.mxu0 0
    %235 = vmatpush1.bf16.msra.mxu0 0
    %236 = vmatprep.subr.bf16.mxu0 0
    %237 = vmatpush1.bf16.msra.mxu0 0
    %238 = vmatprep.subr.bf16.mxu0 0
    %239 = vmatpush1.bf16.msra.mxu0 0
    %240 = vmatprep.subr.bf16.mxu0 0
    %241 = vmatpush1.bf16.msra.mxu0 0
    %242 = vmatprep.subr.bf16.mxu0 0
    %243 = vmatpush1.bf16.msra.mxu0 0
    %244 = vmatprep.mubr.bf16.mxu0 0
    %245 = vmatmul.mubr.bf16.gmra.mrb[0].mxu0 %v140
    %v246 = vpop.f32.mrb[0].mxu0
    %v247 = vadd.f32 %v162, %v246
    %v248 = vpop.f32.mrb[0].mxu0
    %v249 = vpop.f32.mrb[0].mxu0
    %v250 = vpop.f32.mrb[0].mxu0
    %251 = vdwg.mxu0
    %vm252 = vcmp.gt.f32.partialorder %v247, 0.0
    %v253 = vsel %vm252, 1, 0
    %v254 = vcvt.s32.f32 %v253
    %v255 = vld [vmem:[#allocation2 + $0x10] sm:$0xff]
    %v256 = vadd.f32 %v254, %v255
    %257 = vst [vmem:[#allocation16 + $0x8] sm:$0xff] %v256
    %v258 = vpack.c.bf16 %v256, %v256
    %v259 = vld [vmem:[#allocation8] sm:$0xf]
    %v260 = vld [vmem:[#allocation8 + $0x4] sm:$0xf]
    %v261 = vld [vmem:[#allocation8 + $0x8] sm:$0xf]
    %v262 = vld [vmem:[#allocation8 + $0xc] sm:$0xf]
    %v263 = vld [vmem:[#allocation8 + $0x10] sm:$0xf]
    %v264 = vld [vmem:[#allocation8 + $0x14] sm:$0xf]
    %v265 = vld [vmem:[#allocation8 + $0x18] sm:$0xf]
    %v266 = vld [vmem:[#allocation8 + $0x1c] sm:$0xf]
    %v267 = vld [vmem:[#allocation8 + $0x20] sm:$0xf]
    %v268 = vld [vmem:[#allocation8 + $0x24] sm:$0xf]
    %v269 = vld [vmem:[#allocation8 + $0x28] sm:$0xf]
    %v270 = vld [vmem:[#allocation8 + $0x2c] sm:$0xf]
    %v271 = vld [vmem:[#allocation8 + $0x30] sm:$0xf]
    %v272 = vld [vmem:[#allocation8 + $0x34] sm:$0xf]
    %v273 = vld [vmem:[#allocation8 + $0x38] sm:$0xf]
    %v274 = vld [vmem:[#allocation8 + $0x3c] sm:$0xf]
    %v275 = vld [vmem:[#allocation5 + $0x1] sm:$0x1]
    %v277 = vlaneseq
    %v278 = vshrl.u32 %v277, 7
    %v279 = vsub.s32 0, %v278
    %v280 = vrot.slane %v275, %v279
    %v298 = vunpack.c.l.b16 %v259
    %v299 = vunpack.c.l.b16 %v260
    %v300 = vunpack.c.l.b16 %v261
    %v301 = vunpack.c.l.b16 %v262
    %v302 = vunpack.c.l.b16 %v263
    %v303 = vunpack.c.l.b16 %v264
    %v304 = vunpack.c.l.b16 %v265
    %v305 = vunpack.c.l.b16 %v266
    %v306 = vunpack.c.l.b16 %v267
    %v307 = vunpack.c.l.b16 %v268
    %v308 = vunpack.c.l.b16 %v269
    %v309 = vunpack.c.l.b16 %v270
    %v310 = vunpack.c.l.b16 %v271
    %v311 = vunpack.c.l.b16 %v272
    %v312 = vunpack.c.l.b16 %v273
    %v313 = vunpack.c.l.b16 %v274
    %v314 = vpack.c.b16 %v299, %v298
    %v315 = vpack.c.b16 %v301, %v300
    %v316 = vpack.c.b16 %v303, %v302
    %v317 = vpack.c.b16 %v305, %v304
    %v318 = vpack.c.b16 %v307, %v306
    %v319 = vpack.c.b16 %v309, %v308
    %v320 = vpack.c.b16 %v311, %v310
    %v321 = vpack.c.b16 %v313, %v312
    %330 = vmatprep.subr.bf16.mxu0 0
    %331 = vmatpush1.bf16.msra.mxu0 %v314
    %332 = vmatprep.subr.bf16.mxu0 0
    %333 = vmatpush1.bf16.msra.mxu0 %v315
    %334 = vmatprep.subr.bf16.mxu0 0
    %335 = vmatpush1.bf16.msra.mxu0 %v316
    %336 = vmatprep.subr.bf16.mxu0 0
    %337 = vmatpush1.bf16.msra.mxu0 %v317
    %338 = vmatprep.subr.bf16.mxu0 0
    %339 = vmatpush1.bf16.msra.mxu0 %v318
    %340 = vmatprep.subr.bf16.mxu0 0
    %341 = vmatpush1.bf16.msra.mxu0 %v319
    %342 = vmatprep.subr.bf16.mxu0 0
    %343 = vmatpush1.bf16.msra.mxu0 %v320
    %344 = vmatprep.subr.bf16.mxu0 0
    %345 = vmatpush1.bf16.msra.mxu0 %v321
    %346 = vmatprep.subr.bf16.mxu0 0
    %347 = vmatpush1.bf16.msra.mxu0 0
    %348 = vmatprep.subr.bf16.mxu0 0
    %349 = vmatpush1.bf16.msra.mxu0 0
    %350 = vmatprep.subr.bf16.mxu0 0
    %351 = vmatpush1.bf16.msra.mxu0 0
    %352 = vmatprep.subr.bf16.mxu0 0
    %353 = vmatpush1.bf16.msra.mxu0 0
    %354 = vmatprep.subr.bf16.mxu0 0
    %355 = vmatpush1.bf16.msra.mxu0 0
    %356 = vmatprep.subr.bf16.mxu0 0
    %357 = vmatpush1.bf16.msra.mxu0 0
    %358 = vmatprep.subr.bf16.mxu0 0
    %359 = vmatpush1.bf16.msra.mxu0 0
    %360 = vmatprep.subr.bf16.mxu0 0
    %361 = vmatpush1.bf16.msra.mxu0 0
    %362 = vmatprep.mubr.bf16.mxu0 0
    %363 = vmatmul.mubr.bf16.gmra.mrb[0].mxu0 %v258
    %v364 = vpop.f32.mrb[0].mxu0
    %v365 = vadd.f32 %v280, %v364
    %v366 = vpop.f32.mrb[0].mxu0
    %v367 = vpop.f32.mrb[0].mxu0
    %v368 = vpop.f32.mrb[0].mxu0
    %369 = vdwg.mxu0
    %vm370 = vcmp.gt.f32.partialorder %v365, 0.0
    %v371 = vsel %vm370, 1, 0
    %v372 = vcvt.s32.f32 %v371
    %v373 = vld [vmem:[#allocation2 + $0x18] sm:$0xff]
    %v374 = vadd.f32 %v372, %v373
    %375 = vst [vmem:[#allocation16 + $0x10] sm:$0xff] %v374
    %v376 = vpack.c.bf16 %v374, %v374
    %v377 = vld [vmem:[#allocation10] sm:$0xf]
    %v378 = vld [vmem:[#allocation10 + $0x4] sm:$0xf]
    %v379 = vld [vmem:[#allocation10 + $0x8] sm:$0xf]
    %v380 = vld [vmem:[#allocation10 + $0xc] sm:$0xf]
    %v381 = vld [vmem:[#allocation10 + $0x10] sm:$0xf]
    %v382 = vld [vmem:[#allocation10 + $0x14] sm:$0xf]
    %v383 = vld [vmem:[#allocation10 + $0x18] sm:$0xf]
    %v384 = vld [vmem:[#allocation10 + $0x1c] sm:$0xf]
    %v385 = vld [vmem:[#allocation10 + $0x20] sm:$0xf]
    %v386 = vld [vmem:[#allocation10 + $0x24] sm:$0xf]
    %v387 = vld [vmem:[#allocation10 + $0x28] sm:$0xf]
    %v388 = vld [vmem:[#allocation10 + $0x2c] sm:$0xf]
    %v389 = vld [vmem:[#allocation10 + $0x30] sm:$0xf]
    %v390 = vld [vmem:[#allocation10 + $0x34] sm:$0xf]
    %v391 = vld [vmem:[#allocation10 + $0x38] sm:$0xf]
    %v392 = vld [vmem:[#allocation10 + $0x3c] sm:$0xf]
    %v393 = vld [vmem:[#allocation5 + $0x2] sm:$0x1]
    %v395 = vlaneseq
    %v396 = vshrl.u32 %v395, 7
    %v397 = vsub.s32 0, %v396
    %v398 = vrot.slane %v393, %v397
    %v416 = vunpack.c.l.b16 %v377
    %v417 = vunpack.c.l.b16 %v378
    %v418 = vunpack.c.l.b16 %v379
    %v419 = vunpack.c.l.b16 %v380
    %v420 = vunpack.c.l.b16 %v381
    %v421 = vunpack.c.l.b16 %v382
    %v422 = vunpack.c.l.b16 %v383
    %v423 = vunpack.c.l.b16 %v384
    %v424 = vunpack.c.l.b16 %v385
    %v425 = vunpack.c.l.b16 %v386
    %v426 = vunpack.c.l.b16 %v387
    %v427 = vunpack.c.l.b16 %v388
    %v428 = vunpack.c.l.b16 %v389
    %v429 = vunpack.c.l.b16 %v390
    %v430 = vunpack.c.l.b16 %v391
    %v431 = vunpack.c.l.b16 %v392
    %v432 = vpack.c.b16 %v417, %v416
    %v433 = vpack.c.b16 %v419, %v418
    %v434 = vpack.c.b16 %v421, %v420
    %v435 = vpack.c.b16 %v423, %v422
    %v436 = vpack.c.b16 %v425, %v424
    %v437 = vpack.c.b16 %v427, %v426
    %v438 = vpack.c.b16 %v429, %v428
    %v439 = vpack.c.b16 %v431, %v430
    %448 = vmatprep.subr.bf16.mxu0 0
    %449 = vmatpush1.bf16.msra.mxu0 %v432
    %450 = vmatprep.subr.bf16.mxu0 0
    %451 = vmatpush1.bf16.msra.mxu0 %v433
    %452 = vmatprep.subr.bf16.mxu0 0
    %453 = vmatpush1.bf16.msra.mxu0 %v434
    %454 = vmatprep.subr.bf16.mxu0 0
    %455 = vmatpush1.bf16.msra.mxu0 %v435
    %456 = vmatprep.subr.bf16.mxu0 0
    %457 = vmatpush1.bf16.msra.mxu0 %v436
    %458 = vmatprep.subr.bf16.mxu0 0
    %459 = vmatpush1.bf16.msra.mxu0 %v437
    %460 = vmatprep.subr.bf16.mxu0 0
    %461 = vmatpush1.bf16.msra.mxu0 %v438
    %462 = vmatprep.subr.bf16.mxu0 0
    %463 = vmatpush1.bf16.msra.mxu0 %v439
    %464 = vmatprep.subr.bf16.mxu0 0
    %465 = vmatpush1.bf16.msra.mxu0 0
    %466 = vmatprep.subr.bf16.mxu0 0
    %467 = vmatpush1.bf16.msra.mxu0 0
    %468 = vmatprep.subr.bf16.mxu0 0
    %469 = vmatpush1.bf16.msra.mxu0 0
    %470 = vmatprep.subr.bf16.mxu0 0
    %471 = vmatpush1.bf16.msra.mxu0 0
    %472 = vmatprep.subr.bf16.mxu0 0
    %473 = vmatpush1.bf16.msra.mxu0 0
    %474 = vmatprep.subr.bf16.mxu0 0
    %475 = vmatpush1.bf16.msra.mxu0 0
    %476 = vmatprep.subr.bf16.mxu0 0
    %477 = vmatpush1.bf16.msra.mxu0 0
    %478 = vmatprep.subr.bf16.mxu0 0
    %479 = vmatpush1.bf16.msra.mxu0 0
    %480 = vmatprep.mubr.bf16.mxu0 0
    %481 = vmatmul.mubr.bf16.gmra.mrb[0].mxu0 %v376
    %v482 = vpop.f32.mrb[0].mxu0
    %v483 = vadd.f32 %v398, %v482
    %v484 = vpop.f32.mrb[0].mxu0
    %v485 = vpop.f32.mrb[0].mxu0
    %v486 = vpop.f32.mrb[0].mxu0
    %487 = vdwg.mxu0
    %vm488 = vcmp.gt.f32.partialorder %v483, 0.0
    %v489 = vsel %vm488, 1, 0
    %v490 = vcvt.s32.f32 %v489
    %v491 = vld [vmem:[#allocation2 + $0x20] sm:$0xff]
    %v492 = vadd.f32 %v490, %v491
    %493 = vst [vmem:[#allocation16 + $0x18] sm:$0xff] %v492
    %v494 = vpack.c.bf16 %v492, %v492
    %v495 = vld [vmem:[#allocation11] sm:$0xf]
    %v496 = vld [vmem:[#allocation11 + $0x4] sm:$0xf]
    %v497 = vld [vmem:[#allocation11 + $0x8] sm:$0xf]
    %v498 = vld [vmem:[#allocation11 + $0xc] sm:$0xf]
    %v499 = vld [vmem:[#allocation11 + $0x10] sm:$0xf]
    %v500 = vld [vmem:[#allocation11 + $0x14] sm:$0xf]
    %v501 = vld [vmem:[#allocation11 + $0x18] sm:$0xf]
    %v502 = vld [vmem:[#allocation11 + $0x1c] sm:$0xf]
    %v503 = vld [vmem:[#allocation11 + $0x20] sm:$0xf]
    %v504 = vld [vmem:[#allocation11 + $0x24] sm:$0xf]
    %v505 = vld [vmem:[#allocation11 + $0x28] sm:$0xf]
    %v506 = vld [vmem:[#allocation11 + $0x2c] sm:$0xf]
    %v507 = vld [vmem:[#allocation11 + $0x30] sm:$0xf]
    %v508 = vld [vmem:[#allocation11 + $0x34] sm:$0xf]
    %v509 = vld [vmem:[#allocation11 + $0x38] sm:$0xf]
    %v510 = vld [vmem:[#allocation11 + $0x3c] sm:$0xf]
    %v511 = vld [vmem:[#allocation5 + $0x3] sm:$0x1]
    %v513 = vlaneseq
    %v514 = vshrl.u32 %v513, 7
    %v515 = vsub.s32 0, %v514
    %v516 = vrot.slane %v511, %v515
    %v534 = vunpack.c.l.b16 %v495
    %v535 = vunpack.c.l.b16 %v496
    %v536 = vunpack.c.l.b16 %v497
    %v537 = vunpack.c.l.b16 %v498
    %v538 = vunpack.c.l.b16 %v499
    %v539 = vunpack.c.l.b16 %v500
    %v540 = vunpack.c.l.b16 %v501
    %v541 = vunpack.c.l.b16 %v502
    %v542 = vunpack.c.l.b16 %v503
    %v543 = vunpack.c.l.b16 %v504
    %v544 = vunpack.c.l.b16 %v505
    %v545 = vunpack.c.l.b16 %v506
    %v546 = vunpack.c.l.b16 %v507
    %v547 = vunpack.c.l.b16 %v508
    %v548 = vunpack.c.l.b16 %v509
    %v549 = vunpack.c.l.b16 %v510
    %v550 = vpack.c.b16 %v535, %v534
    %v551 = vpack.c.b16 %v537, %v536
    %v552 = vpack.c.b16 %v539, %v538
    %v553 = vpack.c.b16 %v541, %v540
    %v554 = vpack.c.b16 %v543, %v542
    %v555 = vpack.c.b16 %v545, %v544
    %v556 = vpack.c.b16 %v547, %v546
    %v557 = vpack.c.b16 %v549, %v548
    %566 = vmatprep.subr.bf16.mxu0 0
    %567 = vmatpush1.bf16.msra.mxu0 %v550
    %568 = vmatprep.subr.bf16.mxu0 0
    %569 = vmatpush1.bf16.msra.mxu0 %v551
    %570 = vmatprep.subr.bf16.mxu0 0
    %571 = vmatpush1.bf16.msra.mxu0 %v552
    %572 = vmatprep.subr.bf16.mxu0 0
    %573 = vmatpush1.bf16.msra.mxu0 %v553
    %574 = vmatprep.subr.bf16.mxu0 0
    %575 = vmatpush1.bf16.msra.mxu0 %v554
    %576 = vmatprep.subr.bf16.mxu0 0
    %577 = vmatpush1.bf16.msra.mxu0 %v555
    %578 = vmatprep.subr.bf16.mxu0 0
    %579 = vmatpush1.bf16.msra.mxu0 %v556
    %580 = vmatprep.subr.bf16.mxu0 0
    %581 = vmatpush1.bf16.msra.mxu0 %v557
    %582 = vmatprep.subr.bf16.mxu0 0
    %583 = vmatpush1.bf16.msra.mxu0 0
    %584 = vmatprep.subr.bf16.mxu0 0
    %585 = vmatpush1.bf16.msra.mxu0 0
    %586 = vmatprep.subr.bf16.mxu0 0
    %587 = vmatpush1.bf16.msra.mxu0 0
    %588 = vmatprep.subr.bf16.mxu0 0
    %589 = vmatpush1.bf16.msra.mxu0 0
    %590 = vmatprep.subr.bf16.mxu0 0
    %591 = vmatpush1.bf16.msra.mxu0 0
    %592 = vmatprep.subr.bf16.mxu0 0
    %593 = vmatpush1.bf16.msra.mxu0 0
    %594 = vmatprep.subr.bf16.mxu0 0
    %595 = vmatpush1.bf16.msra.mxu0 0
    %596 = vmatprep.subr.bf16.mxu0 0
    %597 = vmatpush1.bf16.msra.mxu0 0
    %598 = vmatprep.mubr.bf16.mxu0 0
    %599 = vmatmul.mubr.bf16.gmra.mrb[0].mxu0 %v494
    %v600 = vpop.f32.mrb[0].mxu0
    %v601 = vadd.f32 %v516, %v600
    %v602 = vpop.f32.mrb[0].mxu0
    %v603 = vpop.f32.mrb[0].mxu0
    %v604 = vpop.f32.mrb[0].mxu0
    %605 = vdwg.mxu0
    %vm606 = vcmp.gt.f32.partialorder %v601, 0.0
    %v607 = vsel %vm606, 1, 0
    %v608 = vcvt.s32.f32 %v607
    %v609 = vld [vmem:[#allocation2 + $0x28] sm:$0xff]
    %v610 = vadd.f32 %v608, %v609
    %611 = vst [vmem:[#allocation16 + $0x20] sm:$0xff] %v610
    %v612 = vpack.c.bf16 %v610, %v610
    %v613 = vld [vmem:[#allocation13] sm:$0xf]
    %v614 = vld [vmem:[#allocation13 + $0x4] sm:$0xf]
    %v615 = vld [vmem:[#allocation13 + $0x8] sm:$0xf]
    %v616 = vld [vmem:[#allocation13 + $0xc] sm:$0xf]
    %v617 = vld [vmem:[#allocation13 + $0x10] sm:$0xf]
    %v618 = vld [vmem:[#allocation13 + $0x14] sm:$0xf]
    %v619 = vld [vmem:[#allocation13 + $0x18] sm:$0xf]
    %v620 = vld [vmem:[#allocation13 + $0x1c] sm:$0xf]
    %v621 = vld [vmem:[#allocation13 + $0x20] sm:$0xf]
    %v622 = vld [vmem:[#allocation13 + $0x24] sm:$0xf]
    %v623 = vld [vmem:[#allocation13 + $0x28] sm:$0xf]
    %v624 = vld [vmem:[#allocation13 + $0x2c] sm:$0xf]
    %v625 = vld [vmem:[#allocation13 + $0x30] sm:$0xf]
    %v626 = vld [vmem:[#allocation13 + $0x34] sm:$0xf]
    %v627 = vld [vmem:[#allocation13 + $0x38] sm:$0xf]
    %v628 = vld [vmem:[#allocation13 + $0x3c] sm:$0xf]
    %v629 = vld [vmem:[#allocation5 + $0x4] sm:$0x1]
    %v631 = vlaneseq
    %v632 = vshrl.u32 %v631, 7
    %v633 = vsub.s32 0, %v632
    %v634 = vrot.slane %v629, %v633
    %v652 = vunpack.c.l.b16 %v613
    %v653 = vunpack.c.l.b16 %v614
    %v654 = vunpack.c.l.b16 %v615
    %v655 = vunpack.c.l.b16 %v616
    %v656 = vunpack.c.l.b16 %v617
    %v657 = vunpack.c.l.b16 %v618
    %v658 = vunpack.c.l.b16 %v619
    %v659 = vunpack.c.l.b16 %v620
    %v660 = vunpack.c.l.b16 %v621
    %v661 = vunpack.c.l.b16 %v622
    %v662 = vunpack.c.l.b16 %v623
    %v663 = vunpack.c.l.b16 %v624
    %v664 = vunpack.c.l.b16 %v625
    %v665 = vunpack.c.l.b16 %v626
    %v666 = vunpack.c.l.b16 %v627
    %v667 = vunpack.c.l.b16 %v628
    %v668 = vpack.c.b16 %v653, %v652
    %v669 = vpack.c.b16 %v655, %v654
    %v670 = vpack.c.b16 %v657, %v656
    %v671 = vpack.c.b16 %v659, %v658
    %v672 = vpack.c.b16 %v661, %v660
    %v673 = vpack.c.b16 %v663, %v662
    %v674 = vpack.c.b16 %v665, %v664
    %v675 = vpack.c.b16 %v667, %v666
    %684 = vmatprep.subr.bf16.mxu0 0
    %685 = vmatpush1.bf16.msra.mxu0 %v668
    %686 = vmatprep.subr.bf16.mxu0 0
    %687 = vmatpush1.bf16.msra.mxu0 %v669
    %688 = vmatprep.subr.bf16.mxu0 0
    %689 = vmatpush1.bf16.msra.mxu0 %v670
    %690 = vmatprep.subr.bf16.mxu0 0
    %691 = vmatpush1.bf16.msra.mxu0 %v671
    %692 = vmatprep.subr.bf16.mxu0 0
    %693 = vmatpush1.bf16.msra.mxu0 %v672
    %694 = vmatprep.subr.bf16.mxu0 0
    %695 = vmatpush1.bf16.msra.mxu0 %v673
    %696 = vmatprep.subr.bf16.mxu0 0
    %697 = vmatpush1.bf16.msra.mxu0 %v674
    %698 = vmatprep.subr.bf16.mxu0 0
    %699 = vmatpush1.bf16.msra.mxu0 %v675
    %700 = vmatprep.subr.bf16.mxu0 0
    %701 = vmatpush1.bf16.msra.mxu0 0
    %702 = vmatprep.subr.bf16.mxu0 0
    %703 = vmatpush1.bf16.msra.mxu0 0
    %704 = vmatprep.subr.bf16.mxu0 0
    %705 = vmatpush1.bf16.msra.mxu0 0
    %706 = vmatprep.subr.bf16.mxu0 0
    %707 = vmatpush1.bf16.msra.mxu0 0
    %708 = vmatprep.subr.bf16.mxu0 0
    %709 = vmatpush1.bf16.msra.mxu0 0
    %710 = vmatprep.subr.bf16.mxu0 0
    %711 = vmatpush1.bf16.msra.mxu0 0
    %712 = vmatprep.subr.bf16.mxu0 0
    %713 = vmatpush1.bf16.msra.mxu0 0
    %714 = vmatprep.subr.bf16.mxu0 0
    %715 = vmatpush1.bf16.msra.mxu0 0
    %716 = vmatprep.mubr.bf16.mxu0 0
    %717 = vmatmul.mubr.bf16.gmra.mrb[0].mxu0 %v612
    %v718 = vpop.f32.mrb[0].mxu0
    %v719 = vadd.f32 %v634, %v718
    %v720 = vpop.f32.mrb[0].mxu0
    %v721 = vpop.f32.mrb[0].mxu0
    %v722 = vpop.f32.mrb[0].mxu0
    %723 = vdwg.mxu0
    %vm724 = vcmp.gt.f32.partialorder %v719, 0.0
    %v725 = vsel %vm724, 1, 0
    %v726 = vcvt.s32.f32 %v725
    %v727 = vld [vmem:[#allocation2 + $0x30] sm:$0xff]
    %v728 = vadd.f32 %v726, %v727
    %729 = vst [vmem:[#allocation16 + $0x28] sm:$0xff] %v728
    %v730 = vpack.c.bf16 %v728, %v728
    %v731 = vld [vmem:[#allocation14] sm:$0xf]
    %v732 = vld [vmem:[#allocation14 + $0x4] sm:$0xf]
    %v733 = vld [vmem:[#allocation14 + $0x8] sm:$0xf]
    %v734 = vld [vmem:[#allocation14 + $0xc] sm:$0xf]
    %v735 = vld [vmem:[#allocation14 + $0x10] sm:$0xf]
    %v736 = vld [vmem:[#allocation14 + $0x14] sm:$0xf]
    %v737 = vld [vmem:[#allocation14 + $0x18] sm:$0xf]
    %v738 = vld [vmem:[#allocation14 + $0x1c] sm:$0xf]
    %v739 = vld [vmem:[#allocation14 + $0x20] sm:$0xf]
    %v740 = vld [vmem:[#allocation14 + $0x24] sm:$0xf]
    %v741 = vld [vmem:[#allocation14 + $0x28] sm:$0xf]
    %v742 = vld [vmem:[#allocation14 + $0x2c] sm:$0xf]
    %v743 = vld [vmem:[#allocation14 + $0x30] sm:$0xf]
    %v744 = vld [vmem:[#allocation14 + $0x34] sm:$0xf]
    %v745 = vld [vmem:[#allocation14 + $0x38] sm:$0xf]
    %v746 = vld [vmem:[#allocation14 + $0x3c] sm:$0xf]
    %v747 = vld [vmem:[#allocation5 + $0x5] sm:$0x1]
    %v749 = vlaneseq
    %v750 = vshrl.u32 %v749, 7
    %v751 = vsub.s32 0, %v750
    %v752 = vrot.slane %v747, %v751
    %v770 = vunpack.c.l.b16 %v731
    %v771 = vunpack.c.l.b16 %v732
    %v772 = vunpack.c.l.b16 %v733
    %v773 = vunpack.c.l.b16 %v734
    %v774 = vunpack.c.l.b16 %v735
    %v775 = vunpack.c.l.b16 %v736
    %v776 = vunpack.c.l.b16 %v737
    %v777 = vunpack.c.l.b16 %v738
    %v778 = vunpack.c.l.b16 %v739
    %v779 = vunpack.c.l.b16 %v740
    %v780 = vunpack.c.l.b16 %v741
    %v781 = vunpack.c.l.b16 %v742
    %v782 = vunpack.c.l.b16 %v743
    %v783 = vunpack.c.l.b16 %v744
    %v784 = vunpack.c.l.b16 %v745
    %v785 = vunpack.c.l.b16 %v746
    %v786 = vpack.c.b16 %v771, %v770
    %v787 = vpack.c.b16 %v773, %v772
    %v788 = vpack.c.b16 %v775, %v774
    %v789 = vpack.c.b16 %v777, %v776
    %v790 = vpack.c.b16 %v779, %v778
    %v791 = vpack.c.b16 %v781, %v780
    %v792 = vpack.c.b16 %v783, %v782
    %v793 = vpack.c.b16 %v785, %v784
    %802 = vmatprep.subr.bf16.mxu0 0
    %803 = vmatpush1.bf16.msra.mxu0 %v786
    %804 = vmatprep.subr.bf16.mxu0 0
    %805 = vmatpush1.bf16.msra.mxu0 %v787
    %806 = vmatprep.subr.bf16.mxu0 0
    %807 = vmatpush1.bf16.msra.mxu0 %v788
    %808 = vmatprep.subr.bf16.mxu0 0
    %809 = vmatpush1.bf16.msra.mxu0 %v789
    %810 = vmatprep.subr.bf16.mxu0 0
    %811 = vmatpush1.bf16.msra.mxu0 %v790
    %812 = vmatprep.subr.bf16.mxu0 0
    %813 = vmatpush1.bf16.msra.mxu0 %v791
    %814 = vmatprep.subr.bf16.mxu0 0
    %815 = vmatpush1.bf16.msra.mxu0 %v792
    %816 = vmatprep.subr.bf16.mxu0 0
    %817 = vmatpush1.bf16.msra.mxu0 %v793
    %818 = vmatprep.subr.bf16.mxu0 0
    %819 = vmatpush1.bf16.msra.mxu0 0
    %820 = vmatprep.subr.bf16.mxu0 0
    %821 = vmatpush1.bf16.msra.mxu0 0
    %822 = vmatprep.subr.bf16.mxu0 0
    %823 = vmatpush1.bf16.msra.mxu0 0
    %824 = vmatprep.subr.bf16.mxu0 0
    %825 = vmatpush1.bf16.msra.mxu0 0
    %826 = vmatprep.subr.bf16.mxu0 0
    %827 = vmatpush1.bf16.msra.mxu0 0
    %828 = vmatprep.subr.bf16.mxu0 0
    %829 = vmatpush1.bf16.msra.mxu0 0
    %830 = vmatprep.subr.bf16.mxu0 0
    %831 = vmatpush1.bf16.msra.mxu0 0
    %832 = vmatprep.subr.bf16.mxu0 0
    %833 = vmatpush1.bf16.msra.mxu0 0
    %834 = vmatprep.mubr.bf16.mxu0 0
    %835 = vmatmul.mubr.bf16.gmra.mrb[0].mxu0 %v730
    %v836 = vpop.f32.mrb[0].mxu0
    %v837 = vadd.f32 %v752, %v836
    %v838 = vpop.f32.mrb[0].mxu0
    %v839 = vpop.f32.mrb[0].mxu0
    %v840 = vpop.f32.mrb[0].mxu0
    %841 = vdwg.mxu0
    %842 = vst [vmem:[#allocation16 + $0x30] sm:$0xff] %v837
    // Predicated region
    $region66: #{tpu_custom_call.1} parent=1 // pred_check
      _
    $region67: #{tpu_custom_call.1} parent=1 // pred_check_branch
      %844 = sbr.rel (0) target = $region69
    $region68: #{tpu_custom_call.1} parent=1 // pred_region
      %s846 = ssub.s32 896, 896
      %847 = vsyncadd [#allocation4], %s846
      %s849 = sshll.u32 [#allocation16], 4
      %s850 = int_to_ptr.vmem [resolvable:$true] %s849
      %852 = dma.vmem_to_hbm [thread:$0]  %s850, 896, %s8, [#allocation4]
    $region69: #{tpu_custom_call.1} parent=1 // pred_fallthru
      _
    // Predicated region
    $region70: #{tpu_custom_call.1} parent=1 // pred_check
      _
    $region71: #{tpu_custom_call.1} parent=1 // pred_check_branch
      %854 = sbr.rel (0) target = $region73
    $region72: #{tpu_custom_call.1} parent=1 // pred_region
      %855 = dma.done [#allocation4], 896
    $region73: #{tpu_custom_call.1} parent=1 // pred_fallthru
      _
    %856 = vsyncpa [#allocation3], 1
    %857 = vsyncpa [#allocation6], 1
    %858 = vsyncpa [#allocation9], 1
    %859 = vsyncpa [#allocation12], 1
    %860 = vsyncpa [#allocation15], 1
    %861 = vsyncpa [#allocation4], 1

</llo_original>
